<compile_context>
chip_gen: v7x
topology: tpu7x:2x2x1
jax: 0.10.0
libtpu: 0.0.40
codegen_flags: <defaults>
</compile_context>

<pallas_src>
import jax
import jax.numpy as jnp
from jax import lax
from jax.experimental import pallas as pl
from jax.experimental.pallas import tpu as pltpu


_BT_CAP = 8          # max batches fused per step for lane-dense (tn >= 128) outputs
_BT_CAP_SMALL = 32   # larger fusion cap for lane-sparse (tn < 128) outputs


def _largest_divisor_leq(n, cap):
    cap = max(1, min(n, cap))
    for d in range(cap, 0, -1):
        if n % d == 0:
            return d
    return 1


def _pick_tile(dim, candidates):
    for c in candidates:
        if dim >= c and dim % c == 0:
            return c
    return dim  # full dim: always layout-legal


def _sublane_multiple(dtype):
    # Sub-32-bit dtypes pack along sublanes: f32 -> 8, bf16 -> 16, int8/fp8 -> 32.
    return max(8, 32 // jnp.dtype(dtype).itemsize)


def _vmem_budget_and_limit():
    """Return (live-tile budget bytes, vmem_limit_bytes) sized per generation."""
    try:
        cap = int(pltpu.get_tpu_info().vmem_capacity_bytes)
        if cap <= (64 << 20):            # v7x: 64 MiB physical VMEM
            return 20 << 20, 32 << 20
        return 24 << 20, 48 << 20        # v5e / v6e: 128 MiB physical VMEM
    except Exception:
        # Unknown chip: stay under the smallest scoped-VMEM default (16 MiB, v5e).
        return 12 << 20, None


def _permute_matmul_kernel_single(x1_ref, x2_ref, o_ref):
    # Single M step: no accumulator scratch; write the f32 dot straight to the
    # output (cast once).  x1_ref: (bt, M, tk), x2_ref: (bt, M, tn).
    bt = o_ref.shape[0]
    for b in range(bt):
        o_ref[b] = lax.dot_general(
            x1_ref[b], x2_ref[b],
            dimension_numbers=(((0,), (0,)), ((), ())),  # contract over M (transpose-A)
            preferred_element_type=jnp.float32,
        ).astype(o_ref.dtype)


def _permute_matmul_kernel_multi(x1_ref, x2_ref, o_ref, acc_ref):
    # M-reduction across the innermost grid axis; f32 accumulator resident in VMEM.
    m_idx = pl.program_id(3)

    @pl.when(m_idx == 0)
    def _init():
        acc_ref[...] = jnp.zeros_like(acc_ref)

    bt = acc_ref.shape[0]
    for b in range(bt):
        # Transpose-A matmul (contract over M, axis 0 of both 2-D tiles) fed
        # straight to the MXU -- no materialized transpose, f32 accumulation.
        # TODO(synk): verify via pl.lower_as_mlir that no vxpose is emitted on v5e.
        acc_ref[b] = acc_ref[b] + lax.dot_general(
            x1_ref[b], x2_ref[b],
            dimension_numbers=(((0,), (0,)), ((), ())),
            preferred_element_type=jnp.float32,
        )

    @pl.when(m_idx == pl.num_programs(3) - 1)
    def _writeback():
        o_ref[...] = acc_ref[...].astype(o_ref.dtype)


def permute_matmul(x1, x2, *, bt=None, tm=None, tk=None, tn=None):
    """Pallas equivalent of torch.matmul(x1.permute(0, 2, 1), x2).

    x1: (B, M, K), x2: (B, M, N) -> out: (B, K, N), contraction over M.
    """
    B, M, K = x1.shape
    B2, M2, N = x2.shape
    assert B == B2 and M == M2, "batch / contraction dims must match"
    assert x1.dtype == x2.dtype, "x1 / x2 dtypes must match"
    dtype = x1.dtype
    itemsize = jnp.dtype(dtype).itemsize
    sub = _sublane_multiple(dtype)

    budget, vmem_limit = _vmem_budget_and_limit()

    # --- Tile selection -----------------------------------------------------
    # Lane-aligned K/N tiles first (larger tiles -> more operand reuse / higher
    # arithmetic intensity), then as much tm as the budget allows (amortizes
    # the accumulator RMW and per-step overhead), then fuse extra batches.
    if tk is None:
        tk = _pick_tile(K, (512, 256, 128))
    if tn is None:
        tn = _pick_tile(N, (512, 256, 128))
    if tm is None:
        tm = M
        for c in (1024, 512, 256, 128, 64, 32, 16, 8):
            if M >= c and M % c == 0:
                live = 2 * (c * tk + c * tn + tk * tn) * itemsize + tk * tn * 4
                if live <= budget:
                    tm = c
                    break

    if bt is None:
        # Double-buffered input/output tiles + f32 accumulator, per fused batch.
        per_batch = 2 * (tm * tk + tm * tn + tk * tn) * itemsize + tk * tn * 4
        bt_cap = _BT_CAP if min(tk, tn) >= 128 else _BT_CAP_SMALL
        bt_max = max(1, min(bt_cap, budget // per_batch))
        # Keep >= 2 parallel grid steps when K and N each fit in a single tile,
        # so both v7x TensorCores get work.
        if K == tk and N == tn and B >= 2:
            bt_max = min(bt_max, max(1, B // 2))
        bt = _largest_divisor_leq(B, bt_max)

    # --- Even tiling + dtype-aware (sublane, 128) layout legality ------------
    assert B % bt == 0 and M % tm == 0 and K % tk == 0 and N % tn == 0
    assert tm == M or tm % sub == 0, "tm must be a sublane-packing multiple or the full M"
    assert tk == K or tk % 128 == 0, "tk must be a multiple of 128 or the full K"
    assert tn == N or tn % 128 == 0, "tn must be a multiple of 128 or the full N"

    m_steps = M // tm

    cost = pl.CostEstimate(
        flops=2 * B * M * K * N,
        transcendentals=0,
        # Tiling re-reads: x1 is streamed once per N tile, x2 once per K tile.
        bytes_accessed=(B * M * K * (N // tn)
                        + B * M * N * (K // tk)
                        + B * K * N) * itemsize,
    )

    if m_steps == 1:
        grid = (B // bt, K // tk, N // tn)
        in_specs = [
            pl.BlockSpec((bt, tm, tk), lambda b, k, n: (b, 0, k)),
            pl.BlockSpec((bt, tm, tn), lambda b, k, n: (b, 0, n)),
        ]
        out_specs = pl.BlockSpec((bt, tk, tn), lambda b, k, n: (b, k, n))
        scratch_shapes = []
        kernel = _permute_matmul_kernel_single
        dims = ("parallel", "parallel", "parallel")
    else:
        grid = (B // bt, K // tk, N // tn, m_steps)
        in_specs = [
            pl.BlockSpec((bt, tm, tk), lambda b, k, n, m: (b, m, k)),
            pl.BlockSpec((bt, tm, tn), lambda b, k, n, m: (b, m, n)),
        ]
        out_specs = pl.BlockSpec((bt, tk, tn), lambda b, k, n, m: (b, k, n))
        scratch_shapes = [pltpu.VMEM((bt, tk, tn), jnp.float32)]
        kernel = _permute_matmul_kernel_multi
        dims = ("parallel", "parallel", "parallel", "arbitrary")

    return pl.pallas_call(
        kernel,
        out_shape=jax.ShapeDtypeStruct((B, K, N), dtype),
        grid_spec=pltpu.PrefetchScalarGridSpec(
            num_scalar_prefetch=0,
            grid=grid,
            in_specs=in_specs,
            out_specs=out_specs,
            scratch_shapes=scratch_shapes,
        ),
        compiler_params=pltpu.CompilerParams(
            dimension_semantics=dims,
            vmem_limit_bytes=vmem_limit,
        ),
        cost_estimate=cost,
    )(x1, x2)


if __name__ == "__main__":
    key = jax.random.PRNGKey(0)

    def _check(B, M, K, N, **tiles):
        kk = jax.random.fold_in(key, B * 1_000_000 + M * 10_000 + K * 100 + N)
        k1, k2 = jax.random.split(kk)
        x1 = jax.random.normal(k1, (B, M, K), dtype=jnp.float32)
        x2 = jax.random.normal(k2, (B, M, N), dtype=jnp.float32)
        out = jax.block_until_ready(permute_matmul(x1, x2, **tiles))
        ref = jnp.matmul(jnp.transpose(x1, (0, 2, 1)), x2)
        assert out.shape == (B, K, N)
        assert jnp.allclose(out, ref, atol=2e-4, rtol=2e-4), float(
            jnp.max(jnp.abs(out - ref))
        )

    # Tiny shapes matching the module's forward (single M step, no scratch).
    _check(4, 32, 16, 8)
    # Exercise the M-reduction accumulator path + per-step batch grouping.
    _check(4, 32, 16, 8, tm=8, bt=2)
    # Lane-aligned 128-wide K/N tiles with a K grid axis (single M step).
    _check(2, 64, 256, 128, tk=128)
    # Multi-step reduction with lane-aligned 256/128 tiles.
    _check(2, 256, 256, 128, tm=64)

    print("KERNEL_OK")
</pallas_src>

<mosaic_0001>
module attributes {stable_mosaic.version = 11 : i64} {
  func.func @_permute_matmul_kernel_single(%arg0: i32, %arg1: i32, %arg2: i32, %arg3: memref<2x32x16xf32, #tpu.memory_space<vmem>>, %arg4: memref<2x32x8xf32, #tpu.memory_space<vmem>>, %arg5: memref<2x16x8xf32, #tpu.memory_space<vmem>>) attributes {dimension_semantics = [#tpu.dimension_semantics<parallel>, #tpu.dimension_semantics<parallel>, #tpu.dimension_semantics<parallel>], iteration_bounds = array<i64: 2, 1, 1>, scalar_prefetch = 0 : i64, scratch_operands = 0 : i64, tpu.core_type = #tpu.core_type<tc>, window_params = [{transform_indices = @transform_0, window_bounds = array<i64: 2, 32, 16>}, {transform_indices = @transform_1, window_bounds = array<i64: 2, 32, 8>}, {transform_indices = @transform_2, window_bounds = array<i64: 2, 16, 8>}]} {
    %c0 = arith.constant 0 : index
    %c0_0 = arith.constant 0 : index
    %c0_1 = arith.constant 0 : index
    %0 = vector.load %arg3[%c0, %c0_0, %c0_1] : memref<2x32x16xf32, #tpu.memory_space<vmem>>, vector<1x32x16xf32>
    %1 = vector.shape_cast %0 : vector<1x32x16xf32> to vector<32x16xf32>
    %c0_2 = arith.constant 0 : index
    %c0_3 = arith.constant 0 : index
    %c0_4 = arith.constant 0 : index
    %2 = vector.load %arg4[%c0_2, %c0_3, %c0_4] : memref<2x32x8xf32, #tpu.memory_space<vmem>>, vector<1x32x8xf32>
    %3 = vector.shape_cast %2 : vector<1x32x8xf32> to vector<32x8xf32>
    %cst = arith.constant dense<0.000000e+00> : vector<16x8xf32>
    %4 = tpu.matmul %1, %3, %cst {dimension_numbers = #tpu.dot_dimension_numbers<[0], [0], [1], [1], [0, 1, 1, 1], [], []>} : vector<32x16xf32>, vector<32x8xf32>, vector<16x8xf32> -> vector<16x8xf32>
    %c0_5 = arith.constant 0 : index
    %c0_6 = arith.constant 0 : index
    %c0_7 = arith.constant 0 : index
    %5 = vector.load %arg5[%c0_5, %c0_6, %c0_7] : memref<2x16x8xf32, #tpu.memory_space<vmem>>, vector<1x16x8xf32>
    %6 = vector.shape_cast %5 : vector<1x16x8xf32> to vector<16x8xf32>
    %7 = vector.shape_cast %4 : vector<16x8xf32> to vector<1x16x8xf32>
    tpu.vector_store %arg5[%c0_5, %c0_6, %c0_7], %7 {strides = array<i32>} : memref<2x16x8xf32, #tpu.memory_space<vmem>>, vector<1x16x8xf32>,
    %c1 = arith.constant 1 : index
    %c0_8 = arith.constant 0 : index
    %c0_9 = arith.constant 0 : index
    %8 = vector.load %arg3[%c1, %c0_8, %c0_9] : memref<2x32x16xf32, #tpu.memory_space<vmem>>, vector<1x32x16xf32>
    %9 = vector.shape_cast %8 : vector<1x32x16xf32> to vector<32x16xf32>
    %c1_10 = arith.constant 1 : index
    %c0_11 = arith.constant 0 : index
    %c0_12 = arith.constant 0 : index
    %10 = vector.load %arg4[%c1_10, %c0_11, %c0_12] : memref<2x32x8xf32, #tpu.memory_space<vmem>>, vector<1x32x8xf32>
    %11 = vector.shape_cast %10 : vector<1x32x8xf32> to vector<32x8xf32>
    %cst_13 = arith.constant dense<0.000000e+00> : vector<16x8xf32>
    %12 = tpu.matmul %9, %11, %cst_13 {dimension_numbers = #tpu.dot_dimension_numbers<[0], [0], [1], [1], [0, 1, 1, 1], [], []>} : vector<32x16xf32>, vector<32x8xf32>, vector<16x8xf32> -> vector<16x8xf32>
    %c1_14 = arith.constant 1 : index
    %c0_15 = arith.constant 0 : index
    %c0_16 = arith.constant 0 : index
    %13 = vector.load %arg5[%c1_14, %c0_15, %c0_16] : memref<2x16x8xf32, #tpu.memory_space<vmem>>, vector<1x16x8xf32>
    %14 = vector.shape_cast %13 : vector<1x16x8xf32> to vector<16x8xf32>
    %15 = vector.shape_cast %12 : vector<16x8xf32> to vector<1x16x8xf32>
    tpu.vector_store %arg5[%c1_14, %c0_15, %c0_16], %15 {strides = array<i32>} : memref<2x16x8xf32, #tpu.memory_space<vmem>>, vector<1x16x8xf32>,
    return
  }
  func.func @transform_0(%arg0: i32, %arg1: i32, %arg2: i32) -> (i32, i32, i32) {
    %c0_i32 = arith.constant 0 : i32
    %c0_i32_0 = arith.constant 0 : i32
    return %arg0, %c0_i32, %arg1 : i32, i32, i32
  }
  func.func @transform_1(%arg0: i32, %arg1: i32, %arg2: i32) -> (i32, i32, i32) {
    %c0_i32 = arith.constant 0 : i32
    %c0_i32_0 = arith.constant 0 : i32
    return %arg0, %c0_i32, %arg2 : i32, i32, i32
  }
  func.func @transform_2(%arg0: i32, %arg1: i32, %arg2: i32) -> (i32, i32, i32) {
    %c0_i32 = arith.constant 0 : i32
    return %arg0, %arg1, %arg2 : i32, i32, i32
  }
}

</mosaic_0001>

<llo_original>
// kernel: tpu_custom_call.1
$region0: #{tpu_custom_call.1}
  #allocation0 [shape = 'u32[]', space=smem, size = 0x4, offset = 0x4, fixed_abs, tag = 'smem constant byte address 0x4 - core index']
  #allocation1 [shape = 'u32[144,128]{1,0:T(1,128)}', space=vmem, size = 0x12000, scoped, tag = 'internal scratch']
  %s0 = inlined_call_operand.vmem [shape: f32[4,32,16], index: 0, kind: input, shape index: {}]
  %s1 = inlined_call_operand.vmem [shape: f32[4,32,8], index: 1, kind: input, shape index: {}]
  %s2 = inlined_call_operand.vmem [shape: f32[4,16,8], index: 2, kind: output, shape index: {}]
  %s3 = sld [smem:[#allocation0]]
  $region41: #{tpu_custom_call.1} parent=0
    _
  %s5 = ssub.s32 1, %s3
  %s6 = scalar_select 0, %s5, %s3
  loop: start=0, step=1, limit=4
  $region2: #{tpu_custom_call.1} parent=0 // loop_pre_header
    _
  $region3: #{tpu_custom_call.1} parent=0 // loop_header
    %s8 = sphi 0, %s12
    %p9 = scmp.ge.s32.totalorder %s8, 4
    %s15 = sphi 0, %s34
    %s16 = sphi 0, %s30
    %s17 = sphi 0, %s26
    %s18 = sphi 0, %s15
    %s19 = sphi 0, %s16
    %s20 = sphi 0, %s17
    %s21 = sphi 0, %s18
    %s22 = sphi 0, %s19
    %s23 = sphi 0, %s20
    %s39 = sphi 0, %s41
    %s42 = sphi 0, %s39
    %s43 = sphi 0, %s42
    %s59 = sphi 0, %s43
    %s67 = sphi 0, %s69
    %s70 = sphi 0, %s67
    %s71 = sphi 0, %s70
    %s87 = sphi 0, %s71
    %s97 = sphi 0, %s99
    %s100 = sphi 0, %s97
    %s101 = sphi 0, %s100
    %s117 = sphi 0, %s101
  $region4: #{tpu_custom_call.1} parent=0 // loop_header_branch
    %11 = sbr.rel (%p9) target = $region8
  $region5: #{tpu_custom_call.1} parent=0 // loop_body
    %s13 = ssub.s32 %s8, 1
    %s14 = ssub.s32 %s8, 2
    %s24 = sadd.s32 1, %s17
    %p25 = scmp.ge.s32.totalorder %s24, 1
    %s26 = scalar_select %p25, 0, %s24
    %s27 = sadd.s32 1, %s16
    %s28 = scalar_select %p25, %s27, %s16
    %p29 = scmp.ge.s32.totalorder %s28, 1
    %s30 = scalar_select %p29, 0, %s28
    %s31 = sadd.s32 1, %s15
    %s32 = scalar_select %p29, %s31, %s15
    %p33 = scmp.ge.s32.totalorder %s32, 2
    %s34 = scalar_select %p33, 0, %s32
    %s35 = ssub.s32 %s15, %s34
    %s36 = ssub.s32 %s16, %s30
    %s37 = sor.u32 %s35, %s36
    %p38 = scmp.eq.s32.totalorder %s37, 0
    %s40 = sadd.s32 %s39, 1
    %s41 = scalar_select %p38, %s39, %s40
    %p44 = pneg %p38
    %p45 = scmp.eq.s32.totalorder %s8, 1
    %p46 = por %p44, %p45
    %p47 = scmp.ne.s32.totalorder %s39, %s42
    %p48 = scmp.eq.s32.totalorder %s8, 0
    %p49 = por %p47, %p48
    %p50 = scmp.ne.s32.totalorder %s39, %s42
    %p51 = scmp.eq.s32.totalorder %s13, 1
    %p52 = por %p50, %p51
    %p53 = scmp.ne.s32.totalorder %s42, %s43
    %p54 = scmp.eq.s32.totalorder %s13, 0
    %p55 = por %p53, %p54
    %p56 = scmp.ne.s32.totalorder %s42, %s43
    %p57 = scmp.eq.s32.totalorder %s14, 1
    %p58 = por %p56, %p57
    %p60 = scmp.ne.s32.totalorder %s43, %s59
    %p61 = scmp.eq.s32.totalorder %s14, 0
    %p62 = por %p60, %p61
    %s63 = ssub.s32 %s15, %s34
    %s64 = ssub.s32 %s17, %s26
    %s65 = sor.u32 %s63, %s64
    %p66 = scmp.eq.s32.totalorder %s65, 0
    %s68 = sadd.s32 %s67, 1
    %s69 = scalar_select %p66, %s67, %s68
    %p72 = pneg %p66
    %p73 = scmp.eq.s32.totalorder %s8, 1
    %p74 = por %p72, %p73
    %p75 = scmp.ne.s32.totalorder %s67, %s70
    %p76 = scmp.eq.s32.totalorder %s8, 0
    %p77 = por %p75, %p76
    %p78 = scmp.ne.s32.totalorder %s67, %s70
    %p79 = scmp.eq.s32.totalorder %s13, 1
    %p80 = por %p78, %p79
    %p81 = scmp.ne.s32.totalorder %s70, %s71
    %p82 = scmp.eq.s32.totalorder %s13, 0
    %p83 = por %p81, %p82
    %p84 = scmp.ne.s32.totalorder %s70, %s71
    %p85 = scmp.eq.s32.totalorder %s14, 1
    %p86 = por %p84, %p85
    %p88 = scmp.ne.s32.totalorder %s71, %s87
    %p89 = scmp.eq.s32.totalorder %s14, 0
    %p90 = por %p88, %p89
    %s91 = ssub.s32 %s15, %s34
    %s92 = ssub.s32 %s16, %s30
    %s93 = sor.u32 %s91, %s92
    %s94 = ssub.s32 %s17, %s26
    %s95 = sor.u32 %s93, %s94
    %p96 = scmp.eq.s32.totalorder %s95, 0
    %s98 = sadd.s32 %s97, 1
    %s99 = scalar_select %p96, %s97, %s98
    %p102 = pneg %p96
    %p103 = scmp.eq.s32.totalorder %s8, 1
    %p104 = por %p102, %p103
    %p105 = scmp.ne.s32.totalorder %s97, %s100
    %p106 = scmp.eq.s32.totalorder %s8, 0
    %p107 = por %p105, %p106
    %p108 = scmp.ne.s32.totalorder %s97, %s100
    %p109 = scmp.eq.s32.totalorder %s13, 1
    %p110 = por %p108, %p109
    %p111 = scmp.ne.s32.totalorder %s100, %s101
    %p112 = scmp.eq.s32.totalorder %s13, 0
    %p113 = por %p111, %p112
    %p114 = scmp.ne.s32.totalorder %s100, %s101
    %p115 = scmp.eq.s32.totalorder %s14, 1
    %p116 = por %p114, %p115
    %p118 = scmp.ne.s32.totalorder %s101, %s117
    %p119 = scmp.eq.s32.totalorder %s14, 0
    %p120 = por %p118, %p119
    %p121 = scmp.le.s32.totalorder 1, %s8
    %p122 = scmp.lt.s32.totalorder %s8, 3
    %p123 = pnand %p121, %p122
    %p124 = pneg %p123
    // Predicated region
    $region9: #{tpu_custom_call.1} parent=5 // pred_check
      _
    $region10: #{tpu_custom_call.1} parent=5 // pred_check_branch
      %126 = sbr.rel (%p123) target = $region12
    $region11: #{tpu_custom_call.1} parent=5 // pred_region
      %s127 = ssub.s32 %s8, 1
    $region12: #{tpu_custom_call.1} parent=5 // pred_fallthru
      _
    %p128 = scmp.lt.s32.totalorder %s8, 2
    // Predicated region
    $region13: #{tpu_custom_call.1} parent=5 // pred_check
      %p129 = pneg %p128
    $region14: #{tpu_custom_call.1} parent=5 // pred_check_branch
      %131 = sbr.rel (%p129) target = $region16
    $region15: #{tpu_custom_call.1} parent=5 // pred_region
      // Predicated region
      $region17: #{tpu_custom_call.1} parent=15 // pred_check
        %p132 = pneg %p49
      $region18: #{tpu_custom_call.1} parent=15 // pred_check_branch
        %134 = sbr.rel (%p132) target = $region20
      $region19: #{tpu_custom_call.1} parent=15 // pred_region
        %s135 = smul.u32 2, %s15
        %p136 = scmp.lt.s32.totalorder %s135, 3
        %s137 = scalar_select %p136, %s135, 3
        %p138 = scmp.lt.s32.totalorder %s16, 0
        %s139 = scalar_select %p138, %s16, 0
        %s140 = smul.addr %s137, 4
        %s141 = sadd.s32 %s139, %s140
        %s142 = smul.addr %s141, 8
        %s143 = scalar_lea.vmem %s0, %s142
        %s144 = smul.u32 2, %s15
      $region20: #{tpu_custom_call.1} parent=15 // pred_fallthru
        _
      // Predicated region
      $region21: #{tpu_custom_call.1} parent=15 // pred_check
        %p145 = pneg %p77
      $region22: #{tpu_custom_call.1} parent=15 // pred_check_branch
        %147 = sbr.rel (%p145) target = $region24
      $region23: #{tpu_custom_call.1} parent=15 // pred_region
        %s148 = smul.u32 2, %s15
        %p149 = scmp.lt.s32.totalorder %s148, 3
        %s150 = scalar_select %p149, %s148, 3
        %p151 = scmp.lt.s32.totalorder %s17, 0
        %s152 = scalar_select %p151, %s17, 0
        %s153 = smul.addr %s150, 4
        %s154 = sadd.s32 %s152, %s153
        %s155 = smul.addr %s154, 8
        %s156 = scalar_lea.vmem %s1, %s155
        %s157 = smul.u32 2, %s15
      $region24: #{tpu_custom_call.1} parent=15 // pred_fallthru
        _
    $region16: #{tpu_custom_call.1} parent=5 // pred_fallthru
      _
    %p158 = scmp.le.s32.totalorder 1, %s8
    %p159 = scmp.lt.s32.totalorder %s8, 3
    %p160 = pnand %p158, %p159
    %p161 = pneg %p160
    // Predicated region
    $region25: #{tpu_custom_call.1} parent=5 // pred_check
      _
    $region26: #{tpu_custom_call.1} parent=5 // pred_check_branch
      %163 = sbr.rel (%p160) target = $region28
    $region27: #{tpu_custom_call.1} parent=5 // pred_region
      %s164 = ssub.s32 %s8, 1
      %s165 = smul.u32 2, %s18
      %p166 = scmp.lt.s32.totalorder %s165, 3
      %s167 = scalar_select %p166, %s165, 3
      %p168 = scmp.lt.s32.totalorder %s19, 0
      %s169 = scalar_select %p168, %s19, 0
      %s170 = smul.addr %s167, 4
      %s171 = sadd.s32 %s169, %s170
      %s172 = smul.addr %s171, 8
      %s173 = scalar_lea.vmem %s0, %s172
      %p174 = pneg %p55
      %p175 = pneg %p52
      %s176 = smul.u32 2, %s18
      %p177 = scmp.lt.s32.totalorder %s176, 3
      %s178 = scalar_select %p177, %s176, 3
      %p179 = scmp.lt.s32.totalorder %s20, 0
      %s180 = scalar_select %p179, %s20, 0
      %s181 = smul.addr %s178, 4
      %s182 = sadd.s32 %s180, %s181
      %s183 = smul.addr %s182, 8
      %s184 = scalar_lea.vmem %s1, %s183
      %p185 = pneg %p83
      %p186 = pneg %p80
      %p187 = pneg %p113
      %p188 = pneg %p110
      %s189 = smul.u32 2, %s18
      %s190 = smul.u32 2, %s19
      %p191 = scmp.lt.s32.totalorder %s189, 3
      %s192 = scalar_select %p191, %s189, 3
      %p193 = scmp.lt.s32.totalorder %s190, 1
      %s194 = scalar_select %p193, %s190, 1
      %p195 = scmp.lt.s32.totalorder %s20, 0
      %s196 = scalar_select %p195, %s20, 0
      %s197 = sadd.s32 %s196, %s194
      %s198 = smul.addr %s192, 2
      %s199 = sadd.s32 %s197, %s198
      %s200 = smul.addr %s199, 8
      %s201 = scalar_lea.vmem %s2, %s200
      %s202 = smul.u32 2, %s18
      %p203 = scmp.lt.s32.totalorder %s202, 3
      %s204 = scalar_select %p203, %s202, 3
      %p205 = scmp.lt.s32.totalorder %s19, 0
      %s206 = scalar_select %p205, %s19, 0
      %s207 = smul.addr %s204, 4
      %s208 = sadd.s32 %s206, %s207
      %s209 = smul.addr %s208, 8
      %s210 = scalar_lea.vmem %s0, %s209
      %s211 = smul.u32 2, %s18
      %s212 = smul.u32 2, %s18
      %p213 = scmp.lt.s32.totalorder %s212, 3
      %s214 = scalar_select %p213, %s212, 3
      %p215 = scmp.lt.s32.totalorder %s20, 0
      %s216 = scalar_select %p215, %s20, 0
      %s217 = smul.addr %s214, 4
      %s218 = sadd.s32 %s216, %s217
      %s219 = smul.addr %s218, 8
      %s220 = scalar_lea.vmem %s1, %s219
      %s221 = smul.u32 2, %s18
      %s222 = smul.u32 2, %s18
      %s223 = smul.u32 2, %s19
      %p224 = scmp.lt.s32.totalorder %s222, 3
      %s225 = scalar_select %p224, %s222, 3
      %p226 = scmp.lt.s32.totalorder %s223, 1
      %s227 = scalar_select %p226, %s223, 1
      %p228 = scmp.lt.s32.totalorder %s20, 0
      %s229 = scalar_select %p228, %s20, 0
      %s230 = sadd.s32 %s229, %s227
      %s231 = smul.addr %s225, 2
      %s232 = sadd.s32 %s230, %s231
      %s233 = smul.addr %s232, 8
      %s234 = scalar_lea.vmem %s2, %s233
      %s235 = smul.u32 2, %s18
      %s236 = smul.u32 2, %s19
      %v237 = vld [vmem:[%s210] sm:$0xff]
      %v238 = vld [vmem:[%s210 + $0x8] sm:$0xff]
      %v239 = vld [vmem:[%s210 + $0x10] sm:$0xff]
      %v240 = vld [vmem:[%s210 + $0x18] sm:$0xff]
      %v241 = vld [vmem:[%s220] sm:$0xff]
      %v242 = vld [vmem:[%s220 + $0x8] sm:$0xff]
      %v243 = vld [vmem:[%s220 + $0x10] sm:$0xff]
      %v244 = vld [vmem:[%s220 + $0x18] sm:$0xff]
      %245 = vxpose.xlu0.b32.start [1/16] %v237, 128
      %246 = vxpose.xlu0.b32.cont [2/16] %v238, 128
      %247 = vxpose.xlu0.b32.cont [3/16] %v239, 128
      %248 = vxpose.xlu0.b32.cont [4/16] %v240, 128
      %249 = vxpose.xlu0.b32.cont [5/16] 0.0, 128
      %250 = vxpose.xlu0.b32.cont [6/16] 0.0, 128
      %251 = vxpose.xlu0.b32.cont [7/16] 0.0, 128
      %252 = vxpose.xlu0.b32.cont [8/16] 0.0, 128
      %253 = vxpose.xlu0.b32.cont [9/16] 0.0, 128
      %254 = vxpose.xlu0.b32.cont [10/16] 0.0, 128
      %255 = vxpose.xlu0.b32.cont [11/16] 0.0, 128
      %256 = vxpose.xlu0.b32.cont [12/16] 0.0, 128
      %257 = vxpose.xlu0.b32.cont [13/16] 0.0, 128
      %258 = vxpose.xlu0.b32.cont [14/16] 0.0, 128
      %259 = vxpose.xlu0.b32.cont [15/16] 0.0, 128
      %260 = vxpose.xlu0.b32.end [16/16] 0.0, 128
      %v261 = vpop.trf.xlu0
      %v262 = vpop.trf.xlu0
      %v263 = vpop.trf.xlu0
      %v264 = vpop.trf.xlu0
      %v265 = vpop.trf.xlu0
      %v266 = vpop.trf.xlu0
      %v267 = vpop.trf.xlu0
      %v268 = vpop.trf.xlu0
      %v269 = vpop.trf.xlu0
      %v270 = vpop.trf.xlu0
      %v271 = vpop.trf.xlu0
      %v272 = vpop.trf.xlu0
      %v273 = vpop.trf.xlu0
      %v274 = vpop.trf.xlu0
      %v275 = vpop.trf.xlu0
      %v276 = vpop.trf.xlu0
      %vm277 = vcmask 261120
      %v279 = vsel %vm277, %v261, 0
      %v282 = vsel %vm277, %v262, 0
      %284 = vmatprep.subr.mxu0 0.0
      %285 = vmatpush1.msra.mxu0 %v241
      %286 = vmatprep.subr.mxu0 0.0
      %287 = vmatpush1.msra.mxu0 %v242
      %288 = vmatprep.subr.mxu0 0.0
      %289 = vmatpush1.msra.mxu0 %v243
      %290 = vmatprep.subr.mxu0 0.0
      %291 = vmatpush1.msra.mxu0 %v244
      %292 = vmatprep.subr.mxu0 0.0
      %293 = vmatpush1.msra.mxu0 0.0
      %294 = vmatprep.subr.mxu0 0.0
      %295 = vmatpush1.msra.mxu0 0.0
      %296 = vmatprep.subr.mxu0 0.0
      %297 = vmatpush1.msra.mxu0 0.0
      %298 = vmatprep.subr.mxu0 0.0
      %299 = vmatpush1.msra.mxu0 0.0
      %300 = vmatprep.subr.mxu0 0.0
      %301 = vmatpush1.msra.mxu0 0.0
      %302 = vmatprep.subr.mxu0 0.0
      %303 = vmatpush1.msra.mxu0 0.0
      %304 = vmatprep.subr.mxu0 0.0
      %305 = vmatpush1.msra.mxu0 0.0
      %306 = vmatprep.subr.mxu0 0.0
      %307 = vmatpush1.msra.mxu0 0.0
      %308 = vmatprep.subr.mxu0 0.0
      %309 = vmatpush1.msra.mxu0 0.0
      %310 = vmatprep.subr.mxu0 0.0
      %311 = vmatpush1.msra.mxu0 0.0
      %312 = vmatprep.subr.mxu0 0.0
      %313 = vmatpush1.msra.mxu0 0.0
      %314 = vmatprep.subr.mxu0 0.0
      %315 = vmatpush1.msra.mxu0 0.0
      %316 = vmatprep.subr.mxu0 0.0
      %317 = vmatpush1.msra.mxu0 0.0
      %318 = vmatprep.subr.mxu0 0.0
      %319 = vmatpush1.msra.mxu0 0.0
      %320 = vmatprep.subr.mxu0 0.0
      %321 = vmatpush1.msra.mxu0 0.0
      %322 = vmatprep.subr.mxu0 0.0
      %323 = vmatpush1.msra.mxu0 0.0
      %324 = vmatprep.subr.mxu0 0.0
      %325 = vmatpush1.msra.mxu0 0.0
      %326 = vmatprep.subr.mxu0 0.0
      %327 = vmatpush1.msra.mxu0 0.0
      %328 = vmatprep.subr.mxu0 0.0
      %329 = vmatpush1.msra.mxu0 0.0
      %330 = vmatprep.subr.mxu0 0.0
      %331 = vmatpush1.msra.mxu0 0.0
      %332 = vmatprep.subr.mxu0 0.0
      %333 = vmatpush1.msra.mxu0 0.0
      %334 = vmatprep.subr.mxu0 0.0
      %335 = vmatpush1.msra.mxu0 0.0
      %336 = vmatprep.subr.mxu0 0.0
      %337 = vmatpush1.msra.mxu0 0.0
      %338 = vmatprep.subr.mxu0 0.0
      %339 = vmatpush1.msra.mxu0 0.0
      %340 = vmatprep.subr.mxu0 0.0
      %341 = vmatpush1.msra.mxu0 0.0
      %342 = vmatprep.subr.mxu0 0.0
      %343 = vmatpush1.msra.mxu0 0.0
      %344 = vmatprep.subr.mxu0 0.0
      %345 = vmatpush1.msra.mxu0 0.0
      %346 = vmatprep.subr.mxu0 0.0
      %347 = vmatpush1.msra.mxu0 0.0
      %348 = vmatprep.mubr.f32.mxu0 0.0
      %349 = vmatmul.mubr.f32.gmra.mrb[0].mxu0 %v279
      %v350 = vpop.f32.mrb[0].mxu0
      %v351 = vadd.f32 0.0, %v350
      %v352 = vpop.f32.mrb[0].mxu0
      %353 = vmatprep.mubr.f32.mxu0 0.0
      %354 = vmatmul.mubr.f32.gmra.mrb[0].mxu0 %v282
      %v355 = vpop.f32.mrb[0].mxu0
      %v356 = vadd.f32 0.0, %v355
      %v357 = vpop.f32.mrb[0].mxu0
      %358 = vdwg.mxu0
      %vm359 = vcmask 64512
      %360 = vst.msk [vmem:[%s234] sm:$0xff] %vm359, %v351
      %361 = vst.msk [vmem:[%s234 + $0x8] sm:$0xff] %vm359, %v356
      %s362 = scalar_lea.vmem %s210, 32
      %v363 = vld [vmem:[%s362] sm:$0xff]
      %v364 = vld [vmem:[%s362 + $0x8] sm:$0xff]
      %v365 = vld [vmem:[%s362 + $0x10] sm:$0xff]
      %v366 = vld [vmem:[%s362 + $0x18] sm:$0xff]
      %s367 = scalar_lea.vmem %s220, 32
      %v368 = vld [vmem:[%s367] sm:$0xff]
      %v369 = vld [vmem:[%s367 + $0x8] sm:$0xff]
      %v370 = vld [vmem:[%s367 + $0x10] sm:$0xff]
      %v371 = vld [vmem:[%s367 + $0x18] sm:$0xff]
      %372 = vxpose.xlu0.b32.start [1/16] %v363, 128
      %373 = vxpose.xlu0.b32.cont [2/16] %v364, 128
      %374 = vxpose.xlu0.b32.cont [3/16] %v365, 128
      %375 = vxpose.xlu0.b32.cont [4/16] %v366, 128
      %376 = vxpose.xlu0.b32.cont [5/16] 0.0, 128
      %377 = vxpose.xlu0.b32.cont [6/16] 0.0, 128
      %378 = vxpose.xlu0.b32.cont [7/16] 0.0, 128
      %379 = vxpose.xlu0.b32.cont [8/16] 0.0, 128
      %380 = vxpose.xlu0.b32.cont [9/16] 0.0, 128
      %381 = vxpose.xlu0.b32.cont [10/16] 0.0, 128
      %382 = vxpose.xlu0.b32.cont [11/16] 0.0, 128
      %383 = vxpose.xlu0.b32.cont [12/16] 0.0, 128
      %384 = vxpose.xlu0.b32.cont [13/16] 0.0, 128
      %385 = vxpose.xlu0.b32.cont [14/16] 0.0, 128
      %386 = vxpose.xlu0.b32.cont [15/16] 0.0, 128
      %387 = vxpose.xlu0.b32.end [16/16] 0.0, 128
      %v388 = vpop.trf.xlu0
      %v389 = vpop.trf.xlu0
      %v390 = vpop.trf.xlu0
      %v391 = vpop.trf.xlu0
      %v392 = vpop.trf.xlu0
      %v393 = vpop.trf.xlu0
      %v394 = vpop.trf.xlu0
      %v395 = vpop.trf.xlu0
      %v396 = vpop.trf.xlu0
      %v397 = vpop.trf.xlu0
      %v398 = vpop.trf.xlu0
      %v399 = vpop.trf.xlu0
      %v400 = vpop.trf.xlu0
      %v401 = vpop.trf.xlu0
      %v402 = vpop.trf.xlu0
      %v403 = vpop.trf.xlu0
      %v405 = vsel %vm277, %v388, 0
      %v408 = vsel %vm277, %v389, 0
      %410 = vmatprep.subr.mxu0 0.0
      %411 = vmatpush1.msra.mxu0 %v368
      %412 = vmatprep.subr.mxu0 0.0
      %413 = vmatpush1.msra.mxu0 %v369
      %414 = vmatprep.subr.mxu0 0.0
      %415 = vmatpush1.msra.mxu0 %v370
      %416 = vmatprep.subr.mxu0 0.0
      %417 = vmatpush1.msra.mxu0 %v371
      %418 = vmatprep.subr.mxu0 0.0
      %419 = vmatpush1.msra.mxu0 0.0
      %420 = vmatprep.subr.mxu0 0.0
      %421 = vmatpush1.msra.mxu0 0.0
      %422 = vmatprep.subr.mxu0 0.0
      %423 = vmatpush1.msra.mxu0 0.0
      %424 = vmatprep.subr.mxu0 0.0
      %425 = vmatpush1.msra.mxu0 0.0
      %426 = vmatprep.subr.mxu0 0.0
      %427 = vmatpush1.msra.mxu0 0.0
      %428 = vmatprep.subr.mxu0 0.0
      %429 = vmatpush1.msra.mxu0 0.0
      %430 = vmatprep.subr.mxu0 0.0
      %431 = vmatpush1.msra.mxu0 0.0
      %432 = vmatprep.subr.mxu0 0.0
      %433 = vmatpush1.msra.mxu0 0.0
      %434 = vmatprep.subr.mxu0 0.0
      %435 = vmatpush1.msra.mxu0 0.0
      %436 = vmatprep.subr.mxu0 0.0
      %437 = vmatpush1.msra.mxu0 0.0
      %438 = vmatprep.subr.mxu0 0.0
      %439 = vmatpush1.msra.mxu0 0.0
      %440 = vmatprep.subr.mxu0 0.0
      %441 = vmatpush1.msra.mxu0 0.0
      %442 = vmatprep.subr.mxu0 0.0
      %443 = vmatpush1.msra.mxu0 0.0
      %444 = vmatprep.subr.mxu0 0.0
      %445 = vmatpush1.msra.mxu0 0.0
      %446 = vmatprep.subr.mxu0 0.0
      %447 = vmatpush1.msra.mxu0 0.0
      %448 = vmatprep.subr.mxu0 0.0
      %449 = vmatpush1.msra.mxu0 0.0
      %450 = vmatprep.subr.mxu0 0.0
      %451 = vmatpush1.msra.mxu0 0.0
      %452 = vmatprep.subr.mxu0 0.0
      %453 = vmatpush1.msra.mxu0 0.0
      %454 = vmatprep.subr.mxu0 0.0
      %455 = vmatpush1.msra.mxu0 0.0
      %456 = vmatprep.subr.mxu0 0.0
      %457 = vmatpush1.msra.mxu0 0.0
      %458 = vmatprep.subr.mxu0 0.0
      %459 = vmatpush1.msra.mxu0 0.0
      %460 = vmatprep.subr.mxu0 0.0
      %461 = vmatpush1.msra.mxu0 0.0
      %462 = vmatprep.subr.mxu0 0.0
      %463 = vmatpush1.msra.mxu0 0.0
      %464 = vmatprep.subr.mxu0 0.0
      %465 = vmatpush1.msra.mxu0 0.0
      %466 = vmatprep.subr.mxu0 0.0
      %467 = vmatpush1.msra.mxu0 0.0
      %468 = vmatprep.subr.mxu0 0.0
      %469 = vmatpush1.msra.mxu0 0.0
      %470 = vmatprep.subr.mxu0 0.0
      %471 = vmatpush1.msra.mxu0 0.0
      %472 = vmatprep.subr.mxu0 0.0
      %473 = vmatpush1.msra.mxu0 0.0
      %474 = vmatprep.mubr.f32.mxu0 0.0
      %475 = vmatmul.mubr.f32.gmra.mrb[0].mxu0 %v405
      %v476 = vpop.f32.mrb[0].mxu0
      %v477 = vadd.f32 0.0, %v476
      %v478 = vpop.f32.mrb[0].mxu0
      %479 = vmatprep.mubr.f32.mxu0 0.0
      %480 = vmatmul.mubr.f32.gmra.mrb[0].mxu0 %v408
      %v481 = vpop.f32.mrb[0].mxu0
      %v482 = vadd.f32 0.0, %v481
      %v483 = vpop.f32.mrb[0].mxu0
      %484 = vdwg.mxu0
      %s485 = scalar_lea.vmem %s234, 16
      %486 = vst.msk [vmem:[%s485] sm:$0xff] %vm359, %v477
      %487 = vst.msk [vmem:[%s485 + $0x8] sm:$0xff] %vm359, %v482
      %s488 = smul.u32 2, %s18
      %s489 = smul.u32 2, %s19
      %p490 = scmp.lt.s32.totalorder %s488, 3
      %s491 = scalar_select %p490, %s488, 3
      %p492 = scmp.lt.s32.totalorder %s489, 1
      %s493 = scalar_select %p492, %s489, 1
      %p494 = scmp.lt.s32.totalorder %s20, 0
      %s495 = scalar_select %p494, %s20, 0
      %s496 = sadd.s32 %s495, %s493
      %s497 = smul.addr %s491, 2
      %s498 = sadd.s32 %s496, %s497
      %s499 = smul.addr %s498, 8
      %s500 = scalar_lea.vmem %s2, %s499
      // Predicated region
      $region29: #{tpu_custom_call.1} parent=27 // pred_check
        %p501 = pneg %p110
      $region30: #{tpu_custom_call.1} parent=27 // pred_check_branch
        %503 = sbr.rel (%p501) target = $region32
      $region31: #{tpu_custom_call.1} parent=27 // pred_region
        %s504 = smul.u32 2, %s18
        %s505 = smul.u32 2, %s19
      $region32: #{tpu_custom_call.1} parent=27 // pred_fallthru
        _
    $region28: #{tpu_custom_call.1} parent=5 // pred_fallthru
      _
    %p506 = scmp.le.s32.totalorder 2, %s8
    // Predicated region
    $region33: #{tpu_custom_call.1} parent=5 // pred_check
      %p507 = pneg %p506
    $region34: #{tpu_custom_call.1} parent=5 // pred_check_branch
      %509 = sbr.rel (%p507) target = $region36
    $region35: #{tpu_custom_call.1} parent=5 // pred_region
      %s510 = ssub.s32 %s8, 2
      // Predicated region
      $region37: #{tpu_custom_call.1} parent=35 // pred_check
        %p511 = pneg %p116
      $region38: #{tpu_custom_call.1} parent=35 // pred_check_branch
        %513 = sbr.rel (%p511) target = $region40
      $region39: #{tpu_custom_call.1} parent=35 // pred_region
        %s514 = smul.u32 2, %s21
        %s515 = smul.u32 2, %s22
        %p516 = scmp.lt.s32.totalorder %s514, 3
        %s517 = scalar_select %p516, %s514, 3
        %p518 = scmp.lt.s32.totalorder %s515, 1
        %s519 = scalar_select %p518, %s515, 1
        %p520 = scmp.lt.s32.totalorder %s23, 0
        %s521 = scalar_select %p520, %s23, 0
        %s522 = sadd.s32 %s521, %s519
        %s523 = smul.addr %s517, 2
        %s524 = sadd.s32 %s522, %s523
        %s525 = smul.addr %s524, 8
        %s526 = scalar_lea.vmem %s2, %s525
      $region40: #{tpu_custom_call.1} parent=35 // pred_fallthru
        _
    $region36: #{tpu_custom_call.1} parent=5 // pred_fallthru
      _
  $region6: #{tpu_custom_call.1} parent=0 // loop_footer
    %s12 = sadd.s32 1, %s8
  $region7: #{tpu_custom_call.1} parent=0 // loop_footer_branch
    %7 = sbr.rel target = $region3
  $region8: #{tpu_custom_call.1} parent=0 // loop_exit
    _

</llo_original>
